<compile_context>
chip_gen: v7x
topology: tpu7x:2x2x1
jax: 0.10.0
libtpu: 0.0.40
codegen_flags: <defaults>
</compile_context>

<pallas_src>
import math

import jax
import jax.numpy as jnp
from jax import lax
from jax.experimental import pallas as pl
from jax.experimental.pallas import tpu as pltpu

# ---------------------------------------------------------------------------
# model dimensions (small synthetic config consistent with the module)
# ---------------------------------------------------------------------------
X_DIM = 16
C_DIM = 8
H_DIM = 32

H1 = 2 * H_DIM                  # 64 : fused layer-1 width  [h_x | h_c]
F_OUT = 3 * H_DIM               # 96 : fused layer-2 width  [x_emb | c_scale | c_shift]

# packed parameter slab: one (96, 96) f32 array, row layout below
_R_W1X = 0                      # rows  0:16, cols  0:32  -> wx1
_R_W1C = X_DIM                  # rows 16:24, cols 32:64  -> wc1
_R_W2 = X_DIM + C_DIM           # rows 24:88              -> fused layer-2 (block-diag)
_R_B1 = _R_W2 + H1              # row 88 : [bx1 | bc1 | 0]
_R_B2 = _R_B1 + 1               # row 89 : [bx2 | bc2]
_R_LNG = _R_B2 + 1              # row 90 : LayerNorm gamma (cols 0:32)
_R_LNB = _R_LNG + 1             # row 91 : LayerNorm beta  (cols 0:32)
P_ROWS = 96                     # padded slab height

LN_EPS = 1e-5


# ---------------------------------------------------------------------------
# Pallas kernel: fused Embedder forward
# ---------------------------------------------------------------------------
def embedder_kernel(x_ref, c_ref, p_ref, out_ref):
    f32 = jnp.float32

    x = x_ref[...].astype(f32)                        # (TB, 16)
    c = c_ref[...].astype(f32)                        # (TB, 8)

    w1x = p_ref[_R_W1X:_R_W1X + X_DIM, 0:H1]          # (16, 64)
    w1c = p_ref[_R_W1C:_R_W1C + C_DIM, 0:H1]          # (8, 64)
    w2 = p_ref[_R_W2:_R_W2 + H1, :]                   # (64, 96) block-diagonal
    b1 = p_ref[_R_B1:_R_B1 + 1, 0:H1]                 # (1, 64)
    b2 = p_ref[_R_B2:_R_B2 + 1, :]                    # (1, 96)
    lng = p_ref[_R_LNG:_R_LNG + 1, 0:H_DIM]           # (1, 32)
    lnb = p_ref[_R_LNB:_R_LNB + 1, 0:H_DIM]           # (1, 32)

    # fused layer 1 (block-diagonal) + SiLU; the [x | c] concat is replaced by
    # two K-sliced dots so no fused activation ever round-trips through HBM.
    z1 = (jnp.dot(x, w1x, preferred_element_type=f32)
          + jnp.dot(c, w1c, preferred_element_type=f32) + b1)        # (TB, 64)
    h1 = z1 * jax.nn.sigmoid(z1)                                     # SiLU (EUP sigmoid)

    # fused layer 2 (block-diagonal, only the 64 live K rows)
    h2 = jnp.dot(h1, w2, preferred_element_type=f32) + b2            # (TB, 96)

    x_emb = h2[:, 0:H_DIM]                # (TB, 32)
    c_scale = h2[:, H_DIM:2 * H_DIM]      # (TB, 32)
    c_shift = h2[:, 2 * H_DIM:3 * H_DIM]  # (TB, 32)

    # LayerNorm over features (biased variance, eps inside sqrt), then FiLM
    mu = jnp.mean(x_emb, axis=-1, keepdims=True)
    var = jnp.mean((x_emb - mu) ** 2, axis=-1, keepdims=True)
    xn = (x_emb - mu) * lax.rsqrt(var + LN_EPS)

    out_ref[...] = ((xn * lng + lnb) * c_scale + c_shift).astype(out_ref.dtype)


# ---------------------------------------------------------------------------
# wrapper
# ---------------------------------------------------------------------------
def _round_up(n, m):
    return ((n + m - 1) // m) * m


def _pick_block_b(batch):
    """Large batch tiles amortize the ~0.35us fixed per-grid-step overhead; on
    big batches keep >=2 grid steps so v7x megacore can shard the batch axis."""
    if batch >= 4096:
        return 2048
    if batch >= 1024:
        return _round_up((batch + 1) // 2, 8)     # two tiles of >=512 rows
    return _round_up(batch, 8)                    # one tile covering a small batch


def embedder_forward(x, c, p_slab, *, block_b=None):
    """emb = LayerNorm(x_emb(x)) * c_scale(c) + c_shift(c)  -> (B, H_DIM)."""
    batch = x.shape[0]
    if block_b is None:
        block_b = _pick_block_b(batch)
    block_b = max(8, _round_up(block_b, 8))

    steps = pl.cdiv(batch, block_b)
    padded = steps * block_b
    if padded != batch:                           # ragged tail: zero-pad, slice after
        x = jnp.pad(x, ((0, padded - batch), (0, 0)))
        c = jnp.pad(c, ((0, padded - batch), (0, 0)))

    out = pl.pallas_call(
        embedder_kernel,
        out_shape=jax.ShapeDtypeStruct((padded, H_DIM), jnp.float32),
        grid_spec=pltpu.PrefetchScalarGridSpec(
            num_scalar_prefetch=0,
            grid=(steps,),
            in_specs=[
                pl.BlockSpec((block_b, X_DIM), lambda i: (i, 0)),  # x streams per tile
                pl.BlockSpec((block_b, C_DIM), lambda i: (i, 0)),  # c streams per tile
                pl.BlockSpec((P_ROWS, F_OUT), lambda i: (0, 0)),   # params: VMEM-resident
            ],
            out_specs=pl.BlockSpec((block_b, H_DIM), lambda i: (i, 0)),
        ),
        compiler_params=pltpu.CompilerParams(
            dimension_semantics=("parallel",),    # v7x: shard batch tiles across TCs
        ),
    )(x.astype(jnp.float32), c.astype(jnp.float32), p_slab)
    return out[:batch]


# ---------------------------------------------------------------------------
# deterministic parameter init (PyTorch-style Kaiming-uniform bounds)
# ---------------------------------------------------------------------------
def _linear_params(key, fan_in, fan_out):
    kw, kb = jax.random.split(key)
    bound = 1.0 / math.sqrt(fan_in)
    w = jax.random.uniform(kw, (fan_in, fan_out), jnp.float32, -bound, bound)
    b = jax.random.uniform(kb, (fan_out,), jnp.float32, -bound, bound)
    return w, b


def make_params(key):
    keys = jax.random.split(key, 4)
    wx1, bx1 = _linear_params(keys[0], X_DIM, H_DIM)       # x_emb: Linear(x_dim, h)
    wx2, bx2 = _linear_params(keys[1], H_DIM, H_DIM)       # x_emb: Linear(h, h)
    wc1, bc1 = _linear_params(keys[2], C_DIM, H_DIM)       # c_emb: Linear(c_dim, h)
    wc2, bc2 = _linear_params(keys[3], H_DIM, 2 * H_DIM)   # c_emb: Linear(h, 2h)
    lng = jnp.ones((H_DIM,), jnp.float32)                  # LayerNorm affine (fresh module)
    lnb = jnp.zeros((H_DIM,), jnp.float32)
    return (wx1, bx1, wx2, bx2, wc1, bc1, wc2, bc2, lng, lnb)


def pack_params(params):
    """Pack every parameter into one (96, 96) f32 slab (single VMEM-resident operand)."""
    (wx1, bx1, wx2, bx2, wc1, bc1, wc2, bc2, lng, lnb) = params
    P = jnp.zeros((P_ROWS, F_OUT), jnp.float32)
    # fused layer 1 (block-diagonal): [x | c] -> [h_x | h_c]
    P = P.at[_R_W1X:_R_W1X + X_DIM, 0:H_DIM].set(wx1)
    P = P.at[_R_W1C:_R_W1C + C_DIM, H_DIM:2 * H_DIM].set(wc1)
    # fused layer 2 (block-diagonal): [h_x | h_c] -> [x_emb | c_scale | c_shift]
    P = P.at[_R_W2:_R_W2 + H_DIM, 0:H_DIM].set(wx2)
    P = P.at[_R_W2 + H_DIM:_R_W2 + 2 * H_DIM, H_DIM:3 * H_DIM].set(wc2)
    # biases + LayerNorm affine
    P = P.at[_R_B1, 0:H_DIM].set(bx1)
    P = P.at[_R_B1, H_DIM:2 * H_DIM].set(bc1)
    P = P.at[_R_B2, 0:H_DIM].set(bx2)
    P = P.at[_R_B2, H_DIM:3 * H_DIM].set(bc2)
    P = P.at[_R_LNG, 0:H_DIM].set(lng)
    P = P.at[_R_LNB, 0:H_DIM].set(lnb)
    return P


# ---------------------------------------------------------------------------
# pure-JAX reference (unpacked params) for a sanity check of the kernel
# ---------------------------------------------------------------------------
def embedder_ref(x, c, params):
    (wx1, bx1, wx2, bx2, wc1, bc1, wc2, bc2, lng, lnb) = params
    silu = lambda z: z * jax.nn.sigmoid(z)
    x_emb = silu(x @ wx1 + bx1) @ wx2 + bx2
    c_out = silu(c @ wc1 + bc1) @ wc2 + bc2
    c_scale, c_shift = c_out[:, :H_DIM], c_out[:, H_DIM:]
    mu = x_emb.mean(-1, keepdims=True)
    var = ((x_emb - mu) ** 2).mean(-1, keepdims=True)
    ln = (x_emb - mu) / jnp.sqrt(var + LN_EPS) * lng + lnb
    return ln * c_scale + c_shift


# ---------------------------------------------------------------------------
if __name__ == "__main__":
    key = jax.random.PRNGKey(0)
    kx, kc, kp = jax.random.split(key, 3)

    params = make_params(kp)
    p_slab = pack_params(params)

    # small demo shape consistent with the module
    B = 8
    x = jax.random.normal(kx, (B, X_DIM), jnp.float32)
    c = jax.random.normal(kc, (B, C_DIM), jnp.float32)

    y = embedder_forward(x, c, p_slab)
    jax.block_until_ready(y)
    y_ref = embedder_ref(x, c, params)
    assert y.shape == (B, H_DIM)
    assert jnp.allclose(y, y_ref, atol=2e-4, rtol=2e-4), (
        f"max abs diff {jnp.max(jnp.abs(y - y_ref))}")

    # ragged batch exercises the pad-to-tile / slice-back path
    B2 = 20
    x2 = jax.random.normal(kx, (B2, X_DIM), jnp.float32)
    c2 = jax.random.normal(kc, (B2, C_DIM), jnp.float32)
    y2 = embedder_forward(x2, c2, p_slab)
    jax.block_until_ready(y2)
    y2_ref = embedder_ref(x2, c2, params)
    assert y2.shape == (B2, H_DIM)
    assert jnp.allclose(y2, y2_ref, atol=2e-4, rtol=2e-4), (
        f"max abs diff {jnp.max(jnp.abs(y2 - y2_ref))}")

    print("KERNEL_OK")
</pallas_src>

<mosaic_0001>
module attributes {stable_mosaic.version = 11 : i64} {
  func.func @embedder_kernel(%arg0: i32, %arg1: memref<8x16xf32, #tpu.memory_space<vmem>>, %arg2: memref<8x8xf32, #tpu.memory_space<vmem>>, %arg3: memref<96x96xf32, #tpu.memory_space<vmem>>, %arg4: memref<8x32xf32, #tpu.memory_space<vmem>>) attributes {dimension_semantics = [#tpu.dimension_semantics<parallel>], iteration_bounds = array<i64: 1>, scalar_prefetch = 0 : i64, scratch_operands = 0 : i64, tpu.core_type = #tpu.core_type<tc>, window_params = [{transform_indices = @transform_0, window_bounds = array<i64: 8, 16>}, {transform_indices = @transform_1, window_bounds = array<i64: 8, 8>}, {pipeline_mode = #tpu.pipeline_mode<synchronous>, transform_indices = @transform_2, window_bounds = array<i64: 96, 96>}, {transform_indices = @transform_3, window_bounds = array<i64: 8, 32>}]} {
    %c0 = arith.constant 0 : index
    %c0_0 = arith.constant 0 : index
    %0 = vector.load %arg1[%c0, %c0_0] : memref<8x16xf32, #tpu.memory_space<vmem>>, vector<8x16xf32>
    %c0_1 = arith.constant 0 : index
    %c0_2 = arith.constant 0 : index
    %1 = vector.load %arg2[%c0_1, %c0_2] : memref<8x8xf32, #tpu.memory_space<vmem>>, vector<8x8xf32>
    %c0_3 = arith.constant 0 : index
    %c0_4 = arith.constant 0 : index
    %2 = vector.load %arg3[%c0_3, %c0_4] : memref<96x96xf32, #tpu.memory_space<vmem>>, vector<16x64xf32>
    %c16 = arith.constant 16 : index
    %c0_5 = arith.constant 0 : index
    %3 = vector.load %arg3[%c16, %c0_5] : memref<96x96xf32, #tpu.memory_space<vmem>>, vector<8x64xf32>
    %c24 = arith.constant 24 : index
    %c0_6 = arith.constant 0 : index
    %4 = vector.load %arg3[%c24, %c0_6] : memref<96x96xf32, #tpu.memory_space<vmem>>, vector<64x96xf32>
    %c88 = arith.constant 88 : index
    %c0_7 = arith.constant 0 : index
    %5 = vector.load %arg3[%c88, %c0_7] : memref<96x96xf32, #tpu.memory_space<vmem>>, vector<1x64xf32>
    %c89 = arith.constant 89 : index
    %c0_8 = arith.constant 0 : index
    %6 = vector.load %arg3[%c89, %c0_8] : memref<96x96xf32, #tpu.memory_space<vmem>>, vector<1x96xf32>
    %c90 = arith.constant 90 : index
    %c0_9 = arith.constant 0 : index
    %7 = vector.load %arg3[%c90, %c0_9] : memref<96x96xf32, #tpu.memory_space<vmem>>, vector<1x32xf32>
    %c91 = arith.constant 91 : index
    %c0_10 = arith.constant 0 : index
    %8 = vector.load %arg3[%c91, %c0_10] : memref<96x96xf32, #tpu.memory_space<vmem>>, vector<1x32xf32>
    %cst = arith.constant dense<0.000000e+00> : vector<8x64xf32>
    %9 = tpu.matmul %0, %2, %cst {dimension_numbers = #tpu.dot_dimension_numbers<[1], [0], [0], [1], [0, 0, 1, 1], [], []>} : vector<8x16xf32>, vector<16x64xf32>, vector<8x64xf32> -> vector<8x64xf32>
    %cst_11 = arith.constant dense<0.000000e+00> : vector<8x64xf32>
    %10 = tpu.matmul %1, %3, %cst_11 {dimension_numbers = #tpu.dot_dimension_numbers<[1], [0], [0], [1], [0, 0, 1, 1], [], []>} : vector<8x8xf32>, vector<8x64xf32>, vector<8x64xf32> -> vector<8x64xf32>
    %11 = arith.addf %9, %10 : vector<8x64xf32>
    %12 = vector.broadcast %5 : vector<1x64xf32> to vector<8x64xf32>
    %13 = arith.addf %11, %12 : vector<8x64xf32>
    %14 = arith.negf %13 : vector<8x64xf32>
    %15 = math.exp %14 : vector<8x64xf32>
    %cst_12 = arith.constant 1.000000e+00 : f32
    %16 = vector.broadcast %cst_12 : f32 to vector<8x64xf32>
    %17 = arith.addf %16, %15 : vector<8x64xf32>
    %18 = arith.divf %16, %17 : vector<8x64xf32>
    %19 = arith.mulf %13, %18 : vector<8x64xf32>
    %cst_13 = arith.constant dense<0.000000e+00> : vector<8x96xf32>
    %20 = tpu.matmul %19, %4, %cst_13 {dimension_numbers = #tpu.dot_dimension_numbers<[1], [0], [0], [1], [0, 0, 1, 1], [], []>} : vector<8x64xf32>, vector<64x96xf32>, vector<8x96xf32> -> vector<8x96xf32>
    %21 = vector.broadcast %6 : vector<1x96xf32> to vector<8x96xf32>
    %22 = arith.addf %20, %21 : vector<8x96xf32>
    %23 = vector.extract_strided_slice %22 {offsets = [0, 0], sizes = [8, 32], strides = [1, 1]} : vector<8x96xf32> to vector<8x32xf32>
    %24 = vector.extract_strided_slice %22 {offsets = [0, 32], sizes = [8, 32], strides = [1, 1]} : vector<8x96xf32> to vector<8x32xf32>
    %25 = vector.extract_strided_slice %22 {offsets = [0, 64], sizes = [8, 32], strides = [1, 1]} : vector<8x96xf32> to vector<8x32xf32>
    %cst_14 = arith.constant dense<0.000000e+00> : vector<8xf32>
    %26 = vector.multi_reduction <add>, %23, %cst_14 [1] : vector<8x32xf32> to vector<8xf32>
    %27 = vector.shape_cast %26 : vector<8xf32> to vector<8x1xf32>
    %cst_15 = arith.constant 3.200000e+01 : f32
    %28 = vector.broadcast %cst_15 : f32 to vector<8x1xf32>
    %29 = arith.divf %27, %28 : vector<8x1xf32>
    %30 = vector.broadcast %29 : vector<8x1xf32> to vector<8x32xf32>
    %31 = arith.subf %23, %30 : vector<8x32xf32>
    %32 = arith.mulf %31, %31 : vector<8x32xf32>
    %cst_16 = arith.constant dense<0.000000e+00> : vector<8xf32>
    %33 = vector.multi_reduction <add>, %32, %cst_16 [1] : vector<8x32xf32> to vector<8xf32>
    %34 = vector.shape_cast %33 : vector<8xf32> to vector<8x1xf32>
    %cst_17 = arith.constant 3.200000e+01 : f32
    %35 = vector.broadcast %cst_17 : f32 to vector<8x1xf32>
    %36 = arith.divf %34, %35 : vector<8x1xf32>
    %37 = vector.broadcast %29 : vector<8x1xf32> to vector<8x32xf32>
    %38 = arith.subf %23, %37 : vector<8x32xf32>
    %cst_18 = arith.constant 9.99999974E-6 : f32
    %39 = vector.broadcast %cst_18 : f32 to vector<8x1xf32>
    %40 = arith.addf %36, %39 : vector<8x1xf32>
    %41 = math.rsqrt %40 : vector<8x1xf32>
    %42 = vector.broadcast %41 : vector<8x1xf32> to vector<8x32xf32>
    %43 = arith.mulf %38, %42 : vector<8x32xf32>
    %44 = vector.broadcast %7 : vector<1x32xf32> to vector<8x32xf32>
    %45 = arith.mulf %43, %44 : vector<8x32xf32>
    %46 = vector.broadcast %8 : vector<1x32xf32> to vector<8x32xf32>
    %47 = arith.addf %45, %46 : vector<8x32xf32>
    %48 = arith.mulf %47, %24 : vector<8x32xf32>
    %49 = arith.addf %48, %25 : vector<8x32xf32>
    %c0_19 = arith.constant 0 : index
    %c0_20 = arith.constant 0 : index
    %50 = vector.load %arg4[%c0_19, %c0_20] : memref<8x32xf32, #tpu.memory_space<vmem>>, vector<8x32xf32>
    tpu.vector_store %arg4[%c0_19, %c0_20], %49 {strides = array<i32>} : memref<8x32xf32, #tpu.memory_space<vmem>>, vector<8x32xf32>,
    return
  }
  func.func @transform_0(%arg0: i32) -> (i32, i32) {
    %c0_i32 = arith.constant 0 : i32
    %c0_i32_0 = arith.constant 0 : i32
    return %arg0, %c0_i32 : i32, i32
  }
  func.func @transform_1(%arg0: i32) -> (i32, i32) {
    %c0_i32 = arith.constant 0 : i32
    %c0_i32_0 = arith.constant 0 : i32
    return %arg0, %c0_i32 : i32, i32
  }
  func.func @transform_2(%arg0: i32) -> (i32, i32) {
    %c0_i32 = arith.constant 0 : i32
    %c0_i32_0 = arith.constant 0 : i32
    %c0_i32_1 = arith.constant 0 : i32
    return %c0_i32, %c0_i32_0 : i32, i32
  }
  func.func @transform_3(%arg0: i32) -> (i32, i32) {
    %c0_i32 = arith.constant 0 : i32
    %c0_i32_0 = arith.constant 0 : i32
    return %arg0, %c0_i32 : i32, i32
  }
}

</mosaic_0001>

<llo_original>
// kernel: tpu_custom_call.1
$region0: #{tpu_custom_call.1}
  #allocation0 [shape = 'u32[]', space=smem, size = 0x4, offset = 0x4, fixed_abs, tag = 'smem constant byte address 0x4 - core index']
  #allocation1 [shape = 'u32[144,128]{1,0:T(1,128)}', space=vmem, size = 0x12000, scoped, tag = 'internal scratch']
  %s0 = inlined_call_operand.hbm [shape: f32[8,16], index: 0, kind: input, shape index: {}]
  %s1 = inlined_call_operand.hbm [shape: f32[8,8], index: 1, kind: input, shape index: {}]
  %s2 = inlined_call_operand.hbm [shape: f32[96,96], index: 2, kind: input, shape index: {}]
  %s3 = inlined_call_operand.hbm [shape: f32[8,32], index: 3, kind: output, shape index: {}]
  %s4 = sld [smem:[#allocation0]]
  $region34: #{tpu_custom_call.1} parent=0
    _
  %s6 = ssub.s32 1, %s4
  %s7 = scalar_select 0, %s6, %s4
  $region1: #{tpu_custom_call.1} parent=0
    #allocation2 [shape = 'u8[4096]{0}', space=vmem, size = 0x1000, scoped, tag = 'input window, operand 0, single buffered']
    #allocation3 [shape = 's32[1]{0}', space=sflag, size = 0x4, scoped, tag = 'scoped memory for tpu_custom_call.1']
    #allocation4 [shape = 's32[1]{0}', space=sflag, size = 0x4, scoped, tag = 'scoped memory for tpu_custom_call.1']
    #allocation5 [shape = 'u8[4096]{0}', space=vmem, size = 0x1000, scoped, tag = 'input window, operand 1, single buffered']
    #allocation6 [shape = 's32[1]{0}', space=sflag, size = 0x4, scoped, tag = 'scoped memory for tpu_custom_call.1']
    #allocation7 [shape = 'u8[49152]{0}', space=vmem, size = 0xc000, scoped, tag = 'input window, operand 2, single buffered']
    #allocation8 [shape = 'u8[4096]{0}', space=vmem, size = 0x1000, scoped, tag = 'output window, operand 0, single buffered']
    %8 = vsyncpa [#allocation3], 0
    %9 = vsyncpa [#allocation6], 0
    %10 = vsyncpa [#allocation4], 0
    // Predicated region
    $region2: #{tpu_custom_call.1} parent=1 // pred_check
      _
    $region3: #{tpu_custom_call.1} parent=1 // pred_check_branch
      %12 = sbr.rel (0) target = $region5
    $region4: #{tpu_custom_call.1} parent=1 // pred_region
      %s14 = ssub.s32 128, 128
      %15 = vsyncadd [#allocation3], %s14
      %s17 = sshll.u32 [#allocation2], 4
      %s18 = int_to_ptr.vmem [resolvable:$true] %s17
      %20 = dma.hbm_to_vmem [thread:$0]  %s0, 128, %s18, [#allocation3]
    $region5: #{tpu_custom_call.1} parent=1 // pred_fallthru
      _
    // Predicated region
    $region6: #{tpu_custom_call.1} parent=1 // pred_check
      _
    $region7: #{tpu_custom_call.1} parent=1 // pred_check_branch
      %22 = sbr.rel (0) target = $region9
    $region8: #{tpu_custom_call.1} parent=1 // pred_region
      %s24 = ssub.s32 128, 128
      %25 = vsyncadd [#allocation6], %s24
      %s27 = sshll.u32 [#allocation5], 4
      %s28 = int_to_ptr.vmem [resolvable:$true] %s27
      %30 = dma.hbm_to_vmem [thread:$0]  %s1, 128, %s28, [#allocation6]
    $region9: #{tpu_custom_call.1} parent=1 // pred_fallthru
      _
    // Predicated region
    $region10: #{tpu_custom_call.1} parent=1 // pred_check
      _
    $region11: #{tpu_custom_call.1} parent=1 // pred_check_branch
      %32 = sbr.rel (0) target = $region13
    $region12: #{tpu_custom_call.1} parent=1 // pred_region
      %s34 = ssub.s32 1536, 1536
      %35 = vsyncadd [#allocation6], %s34
      %s36 = sshll.u32 [#allocation7], 4
      %s37 = int_to_ptr.vmem [resolvable:$true] %s36
      %42 = dma.hbm_to_vmem [thread:$0]  %s2, 1536, %s37, [#allocation6], 128, 128, 8
    $region13: #{tpu_custom_call.1} parent=1 // pred_fallthru
      _
    // Predicated region
    $region14: #{tpu_custom_call.1} parent=1 // pred_check
      _
    $region15: #{tpu_custom_call.1} parent=1 // pred_check_branch
      %44 = sbr.rel (0) target = $region17
    $region16: #{tpu_custom_call.1} parent=1 // pred_region
      %45 = dma.done [#allocation3], 128
    $region17: #{tpu_custom_call.1} parent=1 // pred_fallthru
      _
    // Predicated region
    $region18: #{tpu_custom_call.1} parent=1 // pred_check
      _
    $region19: #{tpu_custom_call.1} parent=1 // pred_check_branch
      %47 = sbr.rel (0) target = $region21
    $region20: #{tpu_custom_call.1} parent=1 // pred_region
      %48 = dma.done [#allocation6], 128
    $region21: #{tpu_custom_call.1} parent=1 // pred_fallthru
      _
    // Predicated region
    $region22: #{tpu_custom_call.1} parent=1 // pred_check
      _
    $region23: #{tpu_custom_call.1} parent=1 // pred_check_branch
      %50 = sbr.rel (0) target = $region25
    $region24: #{tpu_custom_call.1} parent=1 // pred_region
      %51 = dma.done [#allocation6], 1536
    $region25: #{tpu_custom_call.1} parent=1 // pred_fallthru
      _
    %v52 = vld [vmem:[#allocation2] sm:$0xff]
    %v53 = vld [vmem:[#allocation5] sm:$0xff]
    %v54 = vld [vmem:[#allocation7] sm:$0xff]
    %v55 = vld [vmem:[#allocation7 + $0x8] sm:$0xff]
    %v56 = vld [vmem:[#allocation7 + $0x10] sm:$0xff]
    %v57 = vld [vmem:[#allocation7 + $0x18] sm:$0xff]
    %v58 = vld [vmem:[#allocation7 + $0x20] sm:$0xff]
    %v59 = vld [vmem:[#allocation7 + $0x28] sm:$0xff]
    %v60 = vld [vmem:[#allocation7 + $0x30] sm:$0xff]
    %v61 = vld [vmem:[#allocation7 + $0x38] sm:$0xff]
    %v62 = vld [vmem:[#allocation7 + $0x40] sm:$0xff]
    %v63 = vld [vmem:[#allocation7 + $0x48] sm:$0xff]
    %v64 = vld [vmem:[#allocation7 + $0x50] sm:$0xff]
    %v65 = vld [vmem:[#allocation7 + $0x58] sm:$0x1]
    %v66 = vld [vmem:[#allocation7 + $0x59] sm:$0x1]
    %v67 = vld [vmem:[#allocation7 + $0x5a] sm:$0x1]
    %v68 = vld [vmem:[#allocation7 + $0x5b] sm:$0x1]
    %vm69 = vcmask 64512
    %v71 = vsel %vm69, %v53, 0
    %73 = vmatprep.subr.mxu0 0.0
    %74 = vmatpush1.msra.mxu0 %v56
    %75 = vmatprep.subr.mxu0 0.0
    %76 = vmatpush1.msra.mxu0 0.0
    %77 = vmatprep.subr.mxu0 0.0
    %78 = vmatpush1.msra.mxu0 0.0
    %79 = vmatprep.subr.mxu0 0.0
    %80 = vmatpush1.msra.mxu0 0.0
    %81 = vmatprep.subr.mxu0 0.0
    %82 = vmatpush1.msra.mxu0 0.0
    %83 = vmatprep.subr.mxu0 0.0
    %84 = vmatpush1.msra.mxu0 0.0
    %85 = vmatprep.subr.mxu0 0.0
    %86 = vmatpush1.msra.mxu0 0.0
    %87 = vmatprep.subr.mxu0 0.0
    %88 = vmatpush1.msra.mxu0 0.0
    %89 = vmatprep.subr.mxu0 0.0
    %90 = vmatpush1.msra.mxu0 0.0
    %91 = vmatprep.subr.mxu0 0.0
    %92 = vmatpush1.msra.mxu0 0.0
    %93 = vmatprep.subr.mxu0 0.0
    %94 = vmatpush1.msra.mxu0 0.0
    %95 = vmatprep.subr.mxu0 0.0
    %96 = vmatpush1.msra.mxu0 0.0
    %97 = vmatprep.subr.mxu0 0.0
    %98 = vmatpush1.msra.mxu0 0.0
    %99 = vmatprep.subr.mxu0 0.0
    %100 = vmatpush1.msra.mxu0 0.0
    %101 = vmatprep.subr.mxu0 0.0
    %102 = vmatpush1.msra.mxu0 0.0
    %103 = vmatprep.subr.mxu0 0.0
    %104 = vmatpush1.msra.mxu0 0.0
    %105 = vmatprep.subr.mxu0 0.0
    %106 = vmatpush1.msra.mxu0 0.0
    %107 = vmatprep.subr.mxu0 0.0
    %108 = vmatpush1.msra.mxu0 0.0
    %109 = vmatprep.subr.mxu0 0.0
    %110 = vmatpush1.msra.mxu0 0.0
    %111 = vmatprep.subr.mxu0 0.0
    %112 = vmatpush1.msra.mxu0 0.0
    %113 = vmatprep.subr.mxu0 0.0
    %114 = vmatpush1.msra.mxu0 0.0
    %115 = vmatprep.subr.mxu0 0.0
    %116 = vmatpush1.msra.mxu0 0.0
    %117 = vmatprep.subr.mxu0 0.0
    %118 = vmatpush1.msra.mxu0 0.0
    %119 = vmatprep.subr.mxu0 0.0
    %120 = vmatpush1.msra.mxu0 0.0
    %121 = vmatprep.subr.mxu0 0.0
    %122 = vmatpush1.msra.mxu0 0.0
    %123 = vmatprep.subr.mxu0 0.0
    %124 = vmatpush1.msra.mxu0 0.0
    %125 = vmatprep.subr.mxu0 0.0
    %126 = vmatpush1.msra.mxu0 0.0
    %127 = vmatprep.subr.mxu0 0.0
    %128 = vmatpush1.msra.mxu0 0.0
    %129 = vmatprep.subr.mxu0 0.0
    %130 = vmatpush1.msra.mxu0 0.0
    %131 = vmatprep.subr.mxu0 0.0
    %132 = vmatpush1.msra.mxu0 0.0
    %133 = vmatprep.subr.mxu0 0.0
    %134 = vmatpush1.msra.mxu0 0.0
    %135 = vmatprep.subr.mxu0 0.0
    %136 = vmatpush1.msra.mxu0 0.0
    %137 = vmatprep.mubr.f32.mxu0 0.0
    %138 = vmatmul.mubr.f32.gmra.mrb[0].mxu0 %v71
    %v139 = vpop.f32.mrb[0].mxu0
    %v140 = vadd.f32 0.0, %v139
    %v141 = vpop.f32.mrb[0].mxu0
    %142 = vdwg.mxu0
    %vm143 = vcmask 130048
    %v145 = vsel %vm143, %v52, 0
    %147 = vmatprep.subr.mxu0 0.0
    %148 = vmatpush1.msra.mxu0 %v54
    %149 = vmatprep.subr.mxu0 0.0
    %150 = vmatpush1.msra.mxu0 %v55
    %151 = vmatprep.subr.mxu0 0.0
    %152 = vmatpush1.msra.mxu0 0.0
    %153 = vmatprep.subr.mxu0 0.0
    %154 = vmatpush1.msra.mxu0 0.0
    %155 = vmatprep.subr.mxu0 0.0
    %156 = vmatpush1.msra.mxu0 0.0
    %157 = vmatprep.subr.mxu0 0.0
    %158 = vmatpush1.msra.mxu0 0.0
    %159 = vmatprep.subr.mxu0 0.0
    %160 = vmatpush1.msra.mxu0 0.0
    %161 = vmatprep.subr.mxu0 0.0
    %162 = vmatpush1.msra.mxu0 0.0
    %163 = vmatprep.subr.mxu0 0.0
    %164 = vmatpush1.msra.mxu0 0.0
    %165 = vmatprep.subr.mxu0 0.0
    %166 = vmatpush1.msra.mxu0 0.0
    %167 = vmatprep.subr.mxu0 0.0
    %168 = vmatpush1.msra.mxu0 0.0
    %169 = vmatprep.subr.mxu0 0.0
    %170 = vmatpush1.msra.mxu0 0.0
    %171 = vmatprep.subr.mxu0 0.0
    %172 = vmatpush1.msra.mxu0 0.0
    %173 = vmatprep.subr.mxu0 0.0
    %174 = vmatpush1.msra.mxu0 0.0
    %175 = vmatprep.subr.mxu0 0.0
    %176 = vmatpush1.msra.mxu0 0.0
    %177 = vmatprep.subr.mxu0 0.0
    %178 = vmatpush1.msra.mxu0 0.0
    %179 = vmatprep.subr.mxu0 0.0
    %180 = vmatpush1.msra.mxu0 0.0
    %181 = vmatprep.subr.mxu0 0.0
    %182 = vmatpush1.msra.mxu0 0.0
    %183 = vmatprep.subr.mxu0 0.0
    %184 = vmatpush1.msra.mxu0 0.0
    %185 = vmatprep.subr.mxu0 0.0
    %186 = vmatpush1.msra.mxu0 0.0
    %187 = vmatprep.subr.mxu0 0.0
    %188 = vmatpush1.msra.mxu0 0.0
    %189 = vmatprep.subr.mxu0 0.0
    %190 = vmatpush1.msra.mxu0 0.0
    %191 = vmatprep.subr.mxu0 0.0
    %192 = vmatpush1.msra.mxu0 0.0
    %193 = vmatprep.subr.mxu0 0.0
    %194 = vmatpush1.msra.mxu0 0.0
    %195 = vmatprep.subr.mxu0 0.0
    %196 = vmatpush1.msra.mxu0 0.0
    %197 = vmatprep.subr.mxu0 0.0
    %198 = vmatpush1.msra.mxu0 0.0
    %199 = vmatprep.subr.mxu0 0.0
    %200 = vmatpush1.msra.mxu0 0.0
    %201 = vmatprep.subr.mxu0 0.0
    %202 = vmatpush1.msra.mxu0 0.0
    %203 = vmatprep.subr.mxu0 0.0
    %204 = vmatpush1.msra.mxu0 0.0
    %205 = vmatprep.subr.mxu0 0.0
    %206 = vmatpush1.msra.mxu0 0.0
    %207 = vmatprep.subr.mxu0 0.0
    %208 = vmatpush1.msra.mxu0 0.0
    %209 = vmatprep.subr.mxu0 0.0
    %210 = vmatpush1.msra.mxu0 0.0
    %211 = vmatprep.mubr.f32.mxu0 0.0
    %212 = vmatmul.mubr.f32.gmra.mrb[0].mxu0 %v145
    %v213 = vpop.f32.mrb[0].mxu0
    %v214 = vadd.f32 %v140, %v213
    %v215 = vpop.f32.mrb[0].mxu0
    %216 = vdwg.mxu0
    %v217 = vlaneseq
    %v218 = vshrl.u32 %v217, 7
    %v219 = vsub.s32 0, %v218
    %v220 = vrot.slane %v65, %v219
    %v221 = vadd.f32 %v214, %v220
    %v222 = vxor.u32 %v221, 2147483648
    %v223 = vmul.f32 %v222, 1.442695
    %v224 = vpow.pop %v223
    %v225 = vadd.f32 %v224, 1.0
    %v226 = vrcp.pop %v225
    %v227 = vmul.f32 1.0, %v226
    %v228 = vmul.f32 %v221, %v227
    %v229 = vlaneseq
    %v230 = vshrl.u32 %v229, 7
    %v231 = vsub.s32 0, %v230
    %v232 = vrot.slane %v66, %v231
    %vm233 = vcmask 523264
    %v235 = vsel %vm233, %v228, 0
    %237 = vmatprep.subr.mxu0 0.0
    %238 = vmatpush1.msra.mxu0 %v57
    %239 = vmatprep.subr.mxu0 0.0
    %240 = vmatpush1.msra.mxu0 %v58
    %241 = vmatprep.subr.mxu0 0.0
    %242 = vmatpush1.msra.mxu0 %v59
    %243 = vmatprep.subr.mxu0 0.0
    %244 = vmatpush1.msra.mxu0 %v60
    %245 = vmatprep.subr.mxu0 0.0
    %246 = vmatpush1.msra.mxu0 %v61
    %247 = vmatprep.subr.mxu0 0.0
    %248 = vmatpush1.msra.mxu0 %v62
    %249 = vmatprep.subr.mxu0 0.0
    %250 = vmatpush1.msra.mxu0 %v63
    %251 = vmatprep.subr.mxu0 0.0
    %252 = vmatpush1.msra.mxu0 %v64
    %253 = vmatprep.subr.mxu0 0.0
    %254 = vmatpush1.msra.mxu0 0.0
    %255 = vmatprep.subr.mxu0 0.0
    %256 = vmatpush1.msra.mxu0 0.0
    %257 = vmatprep.subr.mxu0 0.0
    %258 = vmatpush1.msra.mxu0 0.0
    %259 = vmatprep.subr.mxu0 0.0
    %260 = vmatpush1.msra.mxu0 0.0
    %261 = vmatprep.subr.mxu0 0.0
    %262 = vmatpush1.msra.mxu0 0.0
    %263 = vmatprep.subr.mxu0 0.0
    %264 = vmatpush1.msra.mxu0 0.0
    %265 = vmatprep.subr.mxu0 0.0
    %266 = vmatpush1.msra.mxu0 0.0
    %267 = vmatprep.subr.mxu0 0.0
    %268 = vmatpush1.msra.mxu0 0.0
    %269 = vmatprep.subr.mxu0 0.0
    %270 = vmatpush1.msra.mxu0 0.0
    %271 = vmatprep.subr.mxu0 0.0
    %272 = vmatpush1.msra.mxu0 0.0
    %273 = vmatprep.subr.mxu0 0.0
    %274 = vmatpush1.msra.mxu0 0.0
    %275 = vmatprep.subr.mxu0 0.0
    %276 = vmatpush1.msra.mxu0 0.0
    %277 = vmatprep.subr.mxu0 0.0
    %278 = vmatpush1.msra.mxu0 0.0
    %279 = vmatprep.subr.mxu0 0.0
    %280 = vmatpush1.msra.mxu0 0.0
    %281 = vmatprep.subr.mxu0 0.0
    %282 = vmatpush1.msra.mxu0 0.0
    %283 = vmatprep.subr.mxu0 0.0
    %284 = vmatpush1.msra.mxu0 0.0
    %285 = vmatprep.subr.mxu0 0.0
    %286 = vmatpush1.msra.mxu0 0.0
    %287 = vmatprep.subr.mxu0 0.0
    %288 = vmatpush1.msra.mxu0 0.0
    %289 = vmatprep.subr.mxu0 0.0
    %290 = vmatpush1.msra.mxu0 0.0
    %291 = vmatprep.subr.mxu0 0.0
    %292 = vmatpush1.msra.mxu0 0.0
    %293 = vmatprep.subr.mxu0 0.0
    %294 = vmatpush1.msra.mxu0 0.0
    %295 = vmatprep.subr.mxu0 0.0
    %296 = vmatpush1.msra.mxu0 0.0
    %297 = vmatprep.subr.mxu0 0.0
    %298 = vmatpush1.msra.mxu0 0.0
    %299 = vmatprep.subr.mxu0 0.0
    %300 = vmatpush1.msra.mxu0 0.0
    %301 = vmatprep.mubr.f32.mxu0 0.0
    %302 = vmatmul.mubr.f32.gmra.mrb[0].mxu0 %v235
    %v303 = vpop.f32.mrb[0].mxu0
    %v304 = vadd.f32 %v232, %v303
    %v305 = vpop.f32.mrb[0].mxu0
    %306 = vdwg.mxu0
    %vm307 = vcmask 261120
    %v308 = vsel %vm307, %v304, 0.0
    %309 = vadd.xlane.f32.xlu0 %v308
    %v310 = vpop.xlane.xlu0 %309
    %v311 = vrcp.pop 32.0
    %v312 = vmul.f32 %v310, %v311
    %v313 = vsub.f32 %v304, %v312
    %v314 = vmul.f32 %v313, %v313
    %v315 = vsel %vm307, %v314, 0.0
    %316 = vadd.xlane.f32.xlu0 %v315
    %v317 = vpop.xlane.xlu0 %316
    %v318 = vmul.f32 %v317, %v311
    %v319 = vadd.f32 %v318, 1e-05
    %v320 = vrsqrt.pop %v319
    %v321 = vmul.f32 %v313, %v320
    %v322 = vlaneseq
    %v323 = vshrl.u32 %v322, 7
    %v324 = vsub.s32 0, %v323
    %v325 = vrot.slane %v67, %v324
    %v326 = vmul.f32 %v321, %v325
    %v327 = vlaneseq
    %v328 = vshrl.u32 %v327, 7
    %v329 = vsub.s32 0, %v328
    %v330 = vrot.slane %v68, %v329
    %v331 = vadd.f32 %v326, %v330
    %333 = vrot.lane.b32.xlu0 %v304, 96
    %v334 = vpop.permute.xlu0 %333
    %v336 = vmul.f32 %v331, %v334
    %337 = vrot.lane.b32.xlu0 %v304, 64
    %v338 = vpop.permute.xlu0 %337
    %v340 = vadd.f32 %v336, %v338
    %341 = vst.msk [vmem:[#allocation8] sm:$0xff] %vm307, %v340
    // Predicated region
    $region26: #{tpu_custom_call.1} parent=1 // pred_check
      _
    $region27: #{tpu_custom_call.1} parent=1 // pred_check_branch
      %343 = sbr.rel (0) target = $region29
    $region28: #{tpu_custom_call.1} parent=1 // pred_region
      %s345 = ssub.s32 128, 128
      %346 = vsyncadd [#allocation4], %s345
      %s348 = sshll.u32 [#allocation8], 4
      %s349 = int_to_ptr.vmem [resolvable:$true] %s348
      %351 = dma.vmem_to_hbm [thread:$0]  %s349, 128, %s3, [#allocation4]
    $region29: #{tpu_custom_call.1} parent=1 // pred_fallthru
      _
    // Predicated region
    $region30: #{tpu_custom_call.1} parent=1 // pred_check
      _
    $region31: #{tpu_custom_call.1} parent=1 // pred_check_branch
      %353 = sbr.rel (0) target = $region33
    $region32: #{tpu_custom_call.1} parent=1 // pred_region
      %354 = dma.done [#allocation4], 128
    $region33: #{tpu_custom_call.1} parent=1 // pred_fallthru
      _
    %355 = vsyncpa [#allocation3], 1
    %356 = vsyncpa [#allocation6], 1
    %357 = vsyncpa [#allocation4], 1

</llo_original>
